<compile_context>
chip_gen: v7x
topology: tpu7x:2x2x1
jax: 0.10.0
libtpu: 0.0.40
codegen_flags: <defaults>
</compile_context>

<pallas_src>
import jax
import jax.numpy as jnp
import numpy as np
from jax.experimental import pallas as pl
from jax.experimental.pallas import tpu as pltpu

IS_TRANSIENT = True   # config.isTransient
NLOC = 3              # config.nloc (P1 triangle)
NGI = 3               # quadrature points per element


def _round_up(x, m):
    return ((x + m - 1) // m) * m


def _choose_tb(B, tb):
    """Pick the per-step batch-row tile."""
    tb = max(8, int(tb))
    if B <= tb:
        if B >= 2048:
            # keep at least two grid steps so both v7x TensorCores get a share
            return _round_up(pl.cdiv(B, 2), 256)
        return B          # single block; block dim == full array dim is always legal
    return _round_up(tb, 8)


def _mk_lv1_kernel(k_ref, R_ref, cdt_ref, nx_ref, dw_ref, e_ref, r_ref, out_ref):
    # k_ref   : SMEM (1,)              R_ref : SMEM (nloc,)
    # cdt_ref : VMEM (1, ngi)          (R.n[:,g])^2/dt  (zeros if not transient)
    # nx_ref  : VMEM (tb, 2*nloc*ngi)  batch-major, columns ordered (deriv, loc, gpt)
    # dw_ref  : VMEM (tb, ngi)
    # e_ref   : VMEM (tb, 1)           r_ref : VMEM (tb, 1)
    # out_ref : VMEM (tb, 2)           col 0 = diag(R^T A R), col 1 = rr1
    ngi = dw_ref.shape[1]
    nloc = R_ref.shape[0]
    k = k_ref[0]

    def r_dot_nx(d):
        # s_d[b, g] = sum_i R[i] * nx[b, d, i, g]  (static unroll -> pure per-lane FMAs)
        base = d * nloc * ngi
        acc = R_ref[0] * nx_ref[:, base:base + ngi]
        for i in range(1, nloc):
            col = base + i * ngi
            acc = acc + R_ref[i] * nx_ref[:, col:col + ngi]
        return acc

    s1 = r_dot_nx(0)                                                 # (tb, ngi)
    s2 = r_dot_nx(1)                                                 # (tb, ngi)
    quad = dw_ref[...] * (k * (s1 * s1 + s2 * s2) + cdt_ref[...])    # (tb, ngi)
    diag = jnp.sum(quad, axis=1, keepdims=True)                      # (tb, 1)

    out_ref[:, 0:1] = diag
    out_ref[:, 1:2] = r_ref[...] - diag * e_ref[...]


def mk_lv1_forward(e_i, r1_1, k, dt, n, nx, detwei, R, *, tb=4096, use_pallas=None):
    f32 = jnp.float32
    B = e_i.shape[0]
    nloc, ngi = n.shape

    n32 = n.astype(f32)
    R32 = R.astype(f32)
    nx32 = nx.astype(f32)          # no-op when already f32
    dw32 = detwei.astype(f32)
    e2 = jnp.reshape(e_i.astype(f32), (B, 1))
    r2 = jnp.reshape(r1_1.astype(f32), (B, 1))

    # batch-independent transient mass coefficient cdt[g] = (R . n[:, g])^2 / dt
    Rn = jnp.einsum('ig,i->g', n32, R32)
    if IS_TRANSIENT:
        cdt = (Rn * Rn) / dt
    else:
        cdt = jnp.zeros((ngi,), f32)
    cdt = cdt.reshape(1, ngi).astype(f32)

    if use_pallas is None:
        use_pallas = B >= 2048
    if not use_pallas:
        # small-B fast path: one fused XLA expression (launch/plumbing dominated regime)
        s1 = jnp.einsum('big,i->bg', nx32[:, 0], R32)
        s2 = jnp.einsum('big,i->bg', nx32[:, 1], R32)
        diag = jnp.sum(dw32 * (k * (s1 * s1 + s2 * s2) + cdt), axis=1, keepdims=True)
        rr1 = r2 - diag * e2
        return diag, rr1

    # ---- Pallas path: batch-major, no transpose / no pad of the big arrays ----
    Kc = 2 * nloc * ngi
    nx_flat = jnp.reshape(nx32, (B, Kc))        # free (contiguous) reshape, no HBM copy

    tb_eff = _choose_tb(B, tb)
    grid = (pl.cdiv(B, tb_eff),)

    k_s = jnp.full((1,), k, dtype=f32)

    out = pl.pallas_call(
        _mk_lv1_kernel,
        out_shape=jax.ShapeDtypeStruct((B, 2), f32),
        grid=grid,
        in_specs=[
            pl.BlockSpec(memory_space=pltpu.MemorySpace.SMEM),        # k   (1,)
            pl.BlockSpec(memory_space=pltpu.MemorySpace.SMEM),        # R   (nloc,)
            pl.BlockSpec((1, ngi), lambda b: (0, 0)),                 # cdt
            pl.BlockSpec((tb_eff, Kc), lambda b: (b, 0)),             # nx  (batch-major)
            pl.BlockSpec((tb_eff, ngi), lambda b: (b, 0)),            # detwei
            pl.BlockSpec((tb_eff, 1), lambda b: (b, 0)),              # e_i
            pl.BlockSpec((tb_eff, 1), lambda b: (b, 0)),              # r1_1
        ],
        out_specs=pl.BlockSpec((tb_eff, 2), lambda b: (b, 0)),
        compiler_params=pltpu.CompilerParams(
            dimension_semantics=("parallel",),
            vmem_limit_bytes=48 * 1024 * 1024),
    )(k_s, R32, cdt, nx_flat, dw32, e2, r2)

    return out[:, 0:1], out[:, 1:2]


def mk_lv1_reference(e_i, r1_1, k, dt, n, nx, detwei, R):
    """Direct jnp translation of the PyTorch module (full element matrices)."""
    B = e_i.shape[0]
    nx1nx1 = jnp.einsum('big,bjg,bg->bij', nx[:, 0], nx[:, 0], detwei)
    nx2nx2 = jnp.einsum('big,bjg,bg->bij', nx[:, 1], nx[:, 1], detwei)
    nxnx = (nx1nx1 + nx2nx2) * k
    nn = jnp.einsum('ig,jg,bg->bij', n, n, detwei)
    if IS_TRANSIENT:
        nxnx = nn / dt + nxnx
    tmp = jnp.einsum('bij,j->bi', nxnx, R)
    diag = jnp.einsum('bi,i->b', tmp, R).reshape(B, 1)
    rr1 = r1_1.reshape(B, 1) - diag * e_i.reshape(B, 1)
    return diag, rr1


if __name__ == "__main__":
    k_coef = 1.5
    dt_val = 0.05
    root = jax.random.PRNGKey(0)
    key_a, key_b = jax.random.split(root, 2)

    def make_inputs(B, key):
        k1, k2, k3, k4, k5, k6 = jax.random.split(key, 6)
        e_i = jax.random.normal(k1, (B, 1), dtype=jnp.float32)
        r1_1 = jax.random.normal(k2, (B, 1), dtype=jnp.float32)
        n = jax.random.normal(k3, (NLOC, NGI), dtype=jnp.float32)
        nx = jax.random.normal(k4, (B, 2, NLOC, NGI), dtype=jnp.float32)
        detwei = jax.random.uniform(k5, (B, NGI), dtype=jnp.float32,
                                    minval=0.1, maxval=1.0)
        R = jax.random.normal(k6, (NLOC,), dtype=jnp.float32)
        return e_i, r1_1, n, nx, detwei, R

    def check(got, want, shape):
        g = np.asarray(jax.block_until_ready(got))
        w = np.asarray(want)
        assert g.shape == shape, (g.shape, shape)
        assert np.allclose(g, w, rtol=1e-4, atol=1e-4), float(np.abs(g - w).max())

    # 1) small shape, single-block Pallas path
    e_i, r1_1, n, nx, detwei, R = make_inputs(16, key_a)
    diag, rr1 = mk_lv1_forward(e_i, r1_1, k_coef, dt_val, n, nx, detwei, R,
                               use_pallas=True)
    diag_ref, rr1_ref = mk_lv1_reference(e_i, r1_1, k_coef, dt_val, n, nx, detwei, R)
    check(diag, diag_ref, (16, 1))
    check(rr1, rr1_ref, (16, 1))

    # 2) multi-step grid + ragged tail (B not a multiple of the tile or of 8)
    e_i, r1_1, n, nx, detwei, R = make_inputs(300, key_b)
    diag, rr1 = mk_lv1_forward(e_i, r1_1, k_coef, dt_val, n, nx, detwei, R,
                               tb=128, use_pallas=True)
    diag_ref, rr1_ref = mk_lv1_reference(e_i, r1_1, k_coef, dt_val, n, nx, detwei, R)
    check(diag, diag_ref, (300, 1))
    check(rr1, rr1_ref, (300, 1))

    # 3) small-B fused fast-path parity (non-Pallas branch)
    diag_f, rr1_f = mk_lv1_forward(e_i, r1_1, k_coef, dt_val, n, nx, detwei, R,
                                   use_pallas=False)
    check(diag_f, diag_ref, (300, 1))
    check(rr1_f, rr1_ref, (300, 1))

    print("KERNEL_OK")
</pallas_src>

<mosaic_0001>
module attributes {stable_mosaic.version = 11 : i64} {
  func.func @_mk_lv1_kernel(%arg0: i32, %arg1: memref<1xf32, #tpu.memory_space<smem>>, %arg2: memref<3xf32, #tpu.memory_space<smem>>, %arg3: memref<1x3xf32, #tpu.memory_space<vmem>>, %arg4: memref<16x18xf32, #tpu.memory_space<vmem>>, %arg5: memref<16x3xf32, #tpu.memory_space<vmem>>, %arg6: memref<16x1xf32, #tpu.memory_space<vmem>>, %arg7: memref<16x1xf32, #tpu.memory_space<vmem>>, %arg8: memref<16x2xf32, #tpu.memory_space<vmem>>) attributes {dimension_semantics = [#tpu.dimension_semantics<parallel>], iteration_bounds = array<i64: 1>, scalar_prefetch = 0 : i64, scratch_operands = 0 : i64, tpu.core_type = #tpu.core_type<tc>, window_params = [{transform_indices = @transform_0, window_bounds = array<i64: 1>}, {transform_indices = @transform_1, window_bounds = array<i64: 3>}, {pipeline_mode = #tpu.pipeline_mode<synchronous>, transform_indices = @transform_2, window_bounds = array<i64: 1, 3>}, {transform_indices = @transform_3, window_bounds = array<i64: 16, 18>}, {transform_indices = @transform_4, window_bounds = array<i64: 16, 3>}, {transform_indices = @transform_5, window_bounds = array<i64: 16, 1>}, {transform_indices = @transform_6, window_bounds = array<i64: 16, 1>}, {transform_indices = @transform_7, window_bounds = array<i64: 16, 2>}]} {
    %c0 = arith.constant 0 : index
    %0 = memref.load %arg1[%c0] : memref<1xf32, #tpu.memory_space<smem>>
    %c0_0 = arith.constant 0 : index
    %1 = memref.load %arg2[%c0_0] : memref<3xf32, #tpu.memory_space<smem>>
    %c0_1 = arith.constant 0 : index
    %c0_2 = arith.constant 0 : index
    %2 = vector.load %arg4[%c0_1, %c0_2] : memref<16x18xf32, #tpu.memory_space<vmem>>, vector<16x3xf32>
    %3 = vector.broadcast %1 : f32 to vector<16x3xf32>
    %4 = arith.mulf %3, %2 : vector<16x3xf32>
    %c1 = arith.constant 1 : index
    %5 = memref.load %arg2[%c1] : memref<3xf32, #tpu.memory_space<smem>>
    %c0_3 = arith.constant 0 : index
    %c3 = arith.constant 3 : index
    %6 = vector.load %arg4[%c0_3, %c3] : memref<16x18xf32, #tpu.memory_space<vmem>>, vector<16x3xf32>
    %7 = vector.broadcast %5 : f32 to vector<16x3xf32>
    %8 = arith.mulf %7, %6 : vector<16x3xf32>
    %9 = arith.addf %4, %8 : vector<16x3xf32>
    %c2 = arith.constant 2 : index
    %10 = memref.load %arg2[%c2] : memref<3xf32, #tpu.memory_space<smem>>
    %c0_4 = arith.constant 0 : index
    %c6 = arith.constant 6 : index
    %11 = vector.load %arg4[%c0_4, %c6] : memref<16x18xf32, #tpu.memory_space<vmem>>, vector<16x3xf32>
    %12 = vector.broadcast %10 : f32 to vector<16x3xf32>
    %13 = arith.mulf %12, %11 : vector<16x3xf32>
    %14 = arith.addf %9, %13 : vector<16x3xf32>
    %c0_5 = arith.constant 0 : index
    %15 = memref.load %arg2[%c0_5] : memref<3xf32, #tpu.memory_space<smem>>
    %c0_6 = arith.constant 0 : index
    %c9 = arith.constant 9 : index
    %16 = vector.load %arg4[%c0_6, %c9] : memref<16x18xf32, #tpu.memory_space<vmem>>, vector<16x3xf32>
    %17 = vector.broadcast %15 : f32 to vector<16x3xf32>
    %18 = arith.mulf %17, %16 : vector<16x3xf32>
    %c1_7 = arith.constant 1 : index
    %19 = memref.load %arg2[%c1_7] : memref<3xf32, #tpu.memory_space<smem>>
    %c0_8 = arith.constant 0 : index
    %c12 = arith.constant 12 : index
    %20 = vector.load %arg4[%c0_8, %c12] : memref<16x18xf32, #tpu.memory_space<vmem>>, vector<16x3xf32>
    %21 = vector.broadcast %19 : f32 to vector<16x3xf32>
    %22 = arith.mulf %21, %20 : vector<16x3xf32>
    %23 = arith.addf %18, %22 : vector<16x3xf32>
    %c2_9 = arith.constant 2 : index
    %24 = memref.load %arg2[%c2_9] : memref<3xf32, #tpu.memory_space<smem>>
    %c0_10 = arith.constant 0 : index
    %c15 = arith.constant 15 : index
    %25 = vector.load %arg4[%c0_10, %c15] : memref<16x18xf32, #tpu.memory_space<vmem>>, vector<16x3xf32>
    %26 = vector.broadcast %24 : f32 to vector<16x3xf32>
    %27 = arith.mulf %26, %25 : vector<16x3xf32>
    %28 = arith.addf %23, %27 : vector<16x3xf32>
    %c0_11 = arith.constant 0 : index
    %c0_12 = arith.constant 0 : index
    %29 = vector.load %arg5[%c0_11, %c0_12] : memref<16x3xf32, #tpu.memory_space<vmem>>, vector<16x3xf32>
    %30 = arith.mulf %14, %14 : vector<16x3xf32>
    %31 = arith.mulf %28, %28 : vector<16x3xf32>
    %32 = arith.addf %30, %31 : vector<16x3xf32>
    %33 = vector.broadcast %0 : f32 to vector<16x3xf32>
    %34 = arith.mulf %33, %32 : vector<16x3xf32>
    %c0_13 = arith.constant 0 : index
    %c0_14 = arith.constant 0 : index
    %35 = vector.load %arg3[%c0_13, %c0_14] : memref<1x3xf32, #tpu.memory_space<vmem>>, vector<1x3xf32>
    %36 = vector.broadcast %35 : vector<1x3xf32> to vector<16x3xf32>
    %37 = arith.addf %34, %36 : vector<16x3xf32>
    %38 = arith.mulf %29, %37 : vector<16x3xf32>
    %cst = arith.constant dense<0.000000e+00> : vector<16xf32>
    %39 = vector.multi_reduction <add>, %38, %cst [1] : vector<16x3xf32> to vector<16xf32>
    %40 = vector.shape_cast %39 : vector<16xf32> to vector<16x1xf32>
    %c0_15 = arith.constant 0 : index
    %c0_16 = arith.constant 0 : index
    %41 = vector.load %arg8[%c0_15, %c0_16] : memref<16x2xf32, #tpu.memory_space<vmem>>, vector<16x1xf32>
    tpu.vector_store %arg8[%c0_15, %c0_16], %40 {strides = array<i32>} : memref<16x2xf32, #tpu.memory_space<vmem>>, vector<16x1xf32>,
    %c0_17 = arith.constant 0 : index
    %c0_18 = arith.constant 0 : index
    %42 = vector.load %arg7[%c0_17, %c0_18] : memref<16x1xf32, #tpu.memory_space<vmem>>, vector<16x1xf32>
    %c0_19 = arith.constant 0 : index
    %c0_20 = arith.constant 0 : index
    %43 = vector.load %arg6[%c0_19, %c0_20] : memref<16x1xf32, #tpu.memory_space<vmem>>, vector<16x1xf32>
    %44 = arith.mulf %40, %43 : vector<16x1xf32>
    %45 = arith.subf %42, %44 : vector<16x1xf32>
    %c0_21 = arith.constant 0 : index
    %c1_22 = arith.constant 1 : index
    %46 = vector.load %arg8[%c0_21, %c1_22] : memref<16x2xf32, #tpu.memory_space<vmem>>, vector<16x1xf32>
    tpu.vector_store %arg8[%c0_21, %c1_22], %45 {strides = array<i32>} : memref<16x2xf32, #tpu.memory_space<vmem>>, vector<16x1xf32>,
    return
  }
  func.func @transform_0(%arg0: i32) -> i32 {
    %c0_i32 = arith.constant 0 : i32
    %c0_i32_0 = arith.constant 0 : i32
    return %c0_i32 : i32
  }
  func.func @transform_1(%arg0: i32) -> i32 {
    %c0_i32 = arith.constant 0 : i32
    %c0_i32_0 = arith.constant 0 : i32
    return %c0_i32 : i32
  }
  func.func @transform_2(%arg0: i32) -> (i32, i32) {
    %c0_i32 = arith.constant 0 : i32
    %c0_i32_0 = arith.constant 0 : i32
    %c0_i32_1 = arith.constant 0 : i32
    return %c0_i32, %c0_i32_0 : i32, i32
  }
  func.func @transform_3(%arg0: i32) -> (i32, i32) {
    %c0_i32 = arith.constant 0 : i32
    %c0_i32_0 = arith.constant 0 : i32
    return %arg0, %c0_i32 : i32, i32
  }
  func.func @transform_4(%arg0: i32) -> (i32, i32) {
    %c0_i32 = arith.constant 0 : i32
    %c0_i32_0 = arith.constant 0 : i32
    return %arg0, %c0_i32 : i32, i32
  }
  func.func @transform_5(%arg0: i32) -> (i32, i32) {
    %c0_i32 = arith.constant 0 : i32
    %c0_i32_0 = arith.constant 0 : i32
    return %arg0, %c0_i32 : i32, i32
  }
  func.func @transform_6(%arg0: i32) -> (i32, i32) {
    %c0_i32 = arith.constant 0 : i32
    %c0_i32_0 = arith.constant 0 : i32
    return %arg0, %c0_i32 : i32, i32
  }
  func.func @transform_7(%arg0: i32) -> (i32, i32) {
    %c0_i32 = arith.constant 0 : i32
    %c0_i32_0 = arith.constant 0 : i32
    return %arg0, %c0_i32 : i32, i32
  }
}

</mosaic_0001>

<llo_original>
// kernel: tpu_custom_call.1
$region0: #{tpu_custom_call.1}
  #allocation0 [shape = 'u32[]', space=smem, size = 0x4, offset = 0x4, fixed_abs, tag = 'smem constant byte address 0x4 - core index']
  #allocation1 [shape = 'u32[144,128]{1,0:T(1,128)}', space=vmem, size = 0x12000, scoped, tag = 'internal scratch']
  #allocation2 [shape = 'f32[1]{0:T(128)S(6)}', space=smem, size = 0x200, scoped, tag = 'scoped memory for tpu_custom_call.1']
  %s0 = inlined_call_operand.<no memory space> [shape: f32[1], index: 0, kind: input, shape index: {}]
  %s1 = inlined_call_operand.vmem [shape: f32[3], index: 1, kind: input, shape index: {}]
  %s2 = inlined_call_operand.vmem [shape: f32[1,3], index: 2, kind: input, shape index: {}]
  %s3 = inlined_call_operand.vmem [shape: f32[16,18], index: 3, kind: input, shape index: {}]
  %s4 = inlined_call_operand.vmem [shape: f32[16,3], index: 4, kind: input, shape index: {}]
  %s5 = inlined_call_operand.vmem [shape: f32[16,1], index: 5, kind: input, shape index: {}]
  %s6 = inlined_call_operand.vmem [shape: f32[16,1], index: 6, kind: input, shape index: {}]
  %s7 = inlined_call_operand.vmem [shape: f32[16,2], index: 7, kind: output, shape index: {}]
  %s8 = sld [smem:[#allocation0]]
  $region42: #{tpu_custom_call.1} parent=0
    _
  %s10 = ssub.s32 1, %s8
  %s11 = scalar_select 0, %s10, %s8
  %12 = sst [smem:[#allocation2]] %s0
  $region1: #{tpu_custom_call.1} parent=0
    #allocation3 [shape = 'u8[512]{0}', space=smem, size = 0x200, scoped, tag = 'input window, operand 1, single buffered']
    #allocation4 [shape = 's32[1]{0}', space=sflag, size = 0x4, scoped, tag = 'scoped memory for tpu_custom_call.1']
    %13 = vsyncpa [#allocation4], 0
    // Predicated region
    $region2: #{tpu_custom_call.1} parent=1 // pred_check
      _
    $region3: #{tpu_custom_call.1} parent=1 // pred_check_branch
      %15 = sbr.rel (0) target = $region5
    $region4: #{tpu_custom_call.1} parent=1 // pred_region
      _
    $region5: #{tpu_custom_call.1} parent=1 // pred_fallthru
      _
    // Predicated region
    $region6: #{tpu_custom_call.1} parent=1 // pred_check
      _
    $region7: #{tpu_custom_call.1} parent=1 // pred_check_branch
      %17 = sbr.rel (0) target = $region9
    $region8: #{tpu_custom_call.1} parent=1 // pred_region
      %s19 = ssub.s32 16, 16
      %20 = vsyncadd [#allocation4], %s19
      %s22 = sshll.u32 %s1, 4
      %s23 = int_to_ptr.vmem [resolvable:$true] %s22
      %25 = dma.vmem_to_smem %s23, 16, [#allocation3], [#allocation4]
    $region9: #{tpu_custom_call.1} parent=1 // pred_fallthru
      _
    // Predicated region
    $region10: #{tpu_custom_call.1} parent=1 // pred_check
      _
    $region11: #{tpu_custom_call.1} parent=1 // pred_check_branch
      %27 = sbr.rel (0) target = $region13
    $region12: #{tpu_custom_call.1} parent=1 // pred_region
      _
    $region13: #{tpu_custom_call.1} parent=1 // pred_fallthru
      _
    // Predicated region
    $region14: #{tpu_custom_call.1} parent=1 // pred_check
      _
    $region15: #{tpu_custom_call.1} parent=1 // pred_check_branch
      %29 = sbr.rel (0) target = $region17
    $region16: #{tpu_custom_call.1} parent=1 // pred_region
      _
    $region17: #{tpu_custom_call.1} parent=1 // pred_fallthru
      _
    // Predicated region
    $region18: #{tpu_custom_call.1} parent=1 // pred_check
      _
    $region19: #{tpu_custom_call.1} parent=1 // pred_check_branch
      %31 = sbr.rel (0) target = $region21
    $region20: #{tpu_custom_call.1} parent=1 // pred_region
      _
    $region21: #{tpu_custom_call.1} parent=1 // pred_fallthru
      _
    // Predicated region
    $region22: #{tpu_custom_call.1} parent=1 // pred_check
      _
    $region23: #{tpu_custom_call.1} parent=1 // pred_check_branch
      %33 = sbr.rel (0) target = $region25
    $region24: #{tpu_custom_call.1} parent=1 // pred_region
      _
    $region25: #{tpu_custom_call.1} parent=1 // pred_fallthru
      _
    // Predicated region
    $region26: #{tpu_custom_call.1} parent=1 // pred_check
      _
    $region27: #{tpu_custom_call.1} parent=1 // pred_check_branch
      %35 = sbr.rel (0) target = $region29
    $region28: #{tpu_custom_call.1} parent=1 // pred_region
      _
    $region29: #{tpu_custom_call.1} parent=1 // pred_fallthru
      _
    // Predicated region
    $region30: #{tpu_custom_call.1} parent=1 // pred_check
      _
    $region31: #{tpu_custom_call.1} parent=1 // pred_check_branch
      %37 = sbr.rel (0) target = $region33
    $region32: #{tpu_custom_call.1} parent=1 // pred_region
      %38 = dma.done [#allocation4], 16
    $region33: #{tpu_custom_call.1} parent=1 // pred_fallthru
      _
    %39 = sfence
    %s40 = sld [smem:[#allocation2]]
    %s41 = sld [smem:[#allocation3]]
    %v42 = vld [vmem:[%s3] sm:$0xff]
    %v43 = vld [vmem:[%s3 + $0x8] sm:$0xff]
    %v44 = vstv %s41
    %v45 = vmul.f32 %v44, %v42
    %v46 = vmul.f32 %v44, %v43
    %s47 = sld [smem:[#allocation3 + $0x1]]
    %v48 = vstv %s47
    %v49 = vmul.f32 %v48, %v42
    %v50 = vmul.f32 %v48, %v43
    %53 = vrot.lane.b32.xlu0 %v49, 125
    %v54 = vpop.permute.xlu0 %53
    %55 = vrot.lane.b32.xlu0 %v50, 125
    %v56 = vpop.permute.xlu0 %55
    %v59 = vadd.f32 %v45, %v54
    %v60 = vadd.f32 %v46, %v56
    %s61 = sld [smem:[#allocation3 + $0x2]]
    %v62 = vstv %s61
    %v63 = vmul.f32 %v62, %v42
    %v64 = vmul.f32 %v62, %v43
    %67 = vrot.lane.b32.xlu0 %v63, 122
    %v68 = vpop.permute.xlu0 %67
    %69 = vrot.lane.b32.xlu0 %v64, 122
    %v70 = vpop.permute.xlu0 %69
    %v73 = vadd.f32 %v59, %v68
    %v74 = vadd.f32 %v60, %v70
    %v75 = vld [vmem:[%s4] sm:$0xff]
    %v76 = vld [vmem:[%s4 + $0x8] sm:$0xff]
    %v77 = vmul.f32 %v73, %v73
    %v78 = vmul.f32 %v74, %v74
    %81 = vrot.lane.b32.xlu0 %v77, 119
    %v82 = vpop.permute.xlu0 %81
    %83 = vrot.lane.b32.xlu0 %v78, 119
    %v84 = vpop.permute.xlu0 %83
    %v87 = vadd.f32 %v77, %v82
    %v88 = vadd.f32 %v78, %v84
    %v89 = vstv %s40
    %v90 = vmul.f32 %v89, %v87
    %v91 = vmul.f32 %v89, %v88
    %v92 = vld [vmem:[%s2] sm:$0x1]
    %v94 = vlaneseq
    %v95 = vshrl.u32 %v94, 7
    %v96 = vsub.s32 0, %v95
    %v97 = vrot.slane %v92, %v96
    %v99 = vadd.f32 %v90, %v97
    %v100 = vadd.f32 %v91, %v97
    %v101 = vmul.f32 %v75, %v99
    %v102 = vmul.f32 %v76, %v100
    %vm103 = vcmask 23552
    %v104 = vsel %vm103, %v101, 0.0
    %105 = vadd.xlane.f32.xlu0 %v104
    %v106 = vpop.xlane.xlu0 %105
    %v107 = vsel %vm103, %v102, 0.0
    %108 = vadd.xlane.f32.xlu0 %v107
    %v109 = vpop.xlane.xlu0 %108
    %vm110 = vcmask 7168
    %111 = vst.msk [vmem:[%s7] sm:$0xff] %vm110, %v106
    %112 = vst.msk [vmem:[%s7 + $0x8] sm:$0xff] %vm110, %v109
    %v113 = vld [vmem:[%s6] sm:$0xff]
    %v114 = vld [vmem:[%s6 + $0x8] sm:$0xff]
    %v115 = vld [vmem:[%s5] sm:$0xff]
    %v116 = vld [vmem:[%s5 + $0x8] sm:$0xff]
    %v117 = vmul.f32 %v106, %v115
    %v118 = vmul.f32 %v109, %v116
    %v119 = vsub.f32 %v113, %v117
    %v120 = vsub.f32 %v114, %v118
    %123 = vrot.lane.b32.xlu0 %v119, 1
    %v124 = vpop.permute.xlu0 %123
    %125 = vrot.lane.b32.xlu0 %v120, 1
    %v126 = vpop.permute.xlu0 %125
    %vm129 = vcmask 15368
    %130 = vst.msk [vmem:[%s7] sm:$0xff] %vm129, %v124
    %131 = vst.msk [vmem:[%s7 + $0x8] sm:$0xff] %vm129, %v126
    // Predicated region
    $region34: #{tpu_custom_call.1} parent=1 // pred_check
      _
    $region35: #{tpu_custom_call.1} parent=1 // pred_check_branch
      %133 = sbr.rel (0) target = $region37
    $region36: #{tpu_custom_call.1} parent=1 // pred_region
      _
    $region37: #{tpu_custom_call.1} parent=1 // pred_fallthru
      _
    // Predicated region
    $region38: #{tpu_custom_call.1} parent=1 // pred_check
      _
    $region39: #{tpu_custom_call.1} parent=1 // pred_check_branch
      %135 = sbr.rel (0) target = $region41
    $region40: #{tpu_custom_call.1} parent=1 // pred_region
      _
    $region41: #{tpu_custom_call.1} parent=1 // pred_fallthru
      _
    %136 = vsyncpa [#allocation4], 1

</llo_original>
